<compile_context>
chip_gen: v7x
topology: tpu7x:2x2x1
jax: 0.10.0
libtpu: 0.0.40
codegen_flags: <defaults>
</compile_context>

<pallas_src>
import jax
import jax.numpy as jnp
from jax.experimental import pallas as pl
from jax.experimental.pallas import tpu as pltpu


# --------------------------------------------------------------------------
# Kernels
# --------------------------------------------------------------------------
def _sage_kernel(a_ref, x_ref, wl_ref, wr_ref, b_ref, out_ref, acc_ref):
    """SAGEConv layer: out = relu((A@x) @ W_l + x @ W_r + b), reduced over k.

    x_ref is the whole (VMEM-resident) feature matrix; the aggregation k-slice
    and the self row-slice are taken in-kernel with pl.ds.
    """
    i = pl.program_id(0)
    k = pl.program_id(1)
    tm, tk = a_ref.shape

    @pl.when(k == 0)
    def _():
        acc_ref[...] = jnp.zeros_like(acc_ref)

    # Mean aggregation: accumulate (row-normalized A tile) @ (feature k-slice).
    xk = x_ref[pl.ds(pl.multiple_of(k * tk, 128), tk), :]
    acc_ref[...] += jnp.dot(a_ref[...], xk, preferred_element_type=jnp.float32)

    @pl.when(k == pl.num_programs(1) - 1)
    def _():
        # Epilogue entirely in f32 (accumulator is never down-cast).
        xm = x_ref[pl.ds(pl.multiple_of(i * tm, 128), tm), :].astype(jnp.float32)
        h = jnp.dot(acc_ref[...], wl_ref[...], preferred_element_type=jnp.float32)
        h += jnp.dot(xm, wr_ref[...], preferred_element_type=jnp.float32)
        h += b_ref[...]
        out_ref[...] = jnp.maximum(h, 0.0).astype(out_ref.dtype)


def _sage_jk_kernel(a_ref, h1_ref, w2l_ref, w2r_ref, b2_ref,
                    w3a_ref, w3b_ref, b3_ref, out_ref, acc_ref):
    """SAGEConv #2 fused with JumpingKnowledge('cat') + Linear + ReLU."""
    i = pl.program_id(0)
    k = pl.program_id(1)
    tm, tk = a_ref.shape

    @pl.when(k == 0)
    def _():
        acc_ref[...] = jnp.zeros_like(acc_ref)

    hk = h1_ref[pl.ds(pl.multiple_of(k * tk, 128), tk), :]
    acc_ref[...] += jnp.dot(a_ref[...], hk, preferred_element_type=jnp.float32)

    @pl.when(k == pl.num_programs(1) - 1)
    def _():
        h1m = h1_ref[pl.ds(pl.multiple_of(i * tm, 128), tm), :].astype(jnp.float32)
        # h2 = relu((A@h1) @ W2_l + h1_self @ W2_r + b2)
        h2 = jnp.dot(acc_ref[...], w2l_ref[...], preferred_element_type=jnp.float32)
        h2 += jnp.dot(h1m, w2r_ref[...], preferred_element_type=jnp.float32)
        h2 = jnp.maximum(h2 + b2_ref[...], 0.0)
        # y = relu([h1 | h2] @ W3 + b3) with W3 split into its h1 / h2 row blocks.
        y = jnp.dot(h1m, w3a_ref[...], preferred_element_type=jnp.float32)
        y += jnp.dot(h2, w3b_ref[...], preferred_element_type=jnp.float32)
        y += b3_ref[...]
        out_ref[...] = jnp.maximum(y, 0.0).astype(out_ref.dtype)


# --------------------------------------------------------------------------
# pallas_call builders
# --------------------------------------------------------------------------
def _sage_conv(adj_p, x_p, w_l, w_r, b, *, tm, tk, out_dtype, vmem_limit_bytes):
    nrows, ncols = adj_p.shape
    nfeat, cp = x_p.shape
    hp = w_l.shape[1]
    grid = (nrows // tm, ncols // tk)
    isz = jnp.dtype(adj_p.dtype).itemsize
    cost = pl.CostEstimate(
        flops=2 * nrows * ncols * cp + 4 * nrows * cp * hp,
        transcendentals=0,
        bytes_accessed=(nrows * ncols + nfeat * cp) * isz
                       + (2 * cp * hp + hp) * 4
                       + nrows * hp * jnp.dtype(out_dtype).itemsize,
    )
    return pl.pallas_call(
        _sage_kernel,
        out_shape=jax.ShapeDtypeStruct((nrows, hp), out_dtype),
        grid_spec=pltpu.PrefetchScalarGridSpec(
            num_scalar_prefetch=0,
            grid=grid,
            in_specs=[
                pl.BlockSpec((tm, tk), lambda i, k: (i, k)),      # A tile
                pl.BlockSpec((nfeat, cp), lambda i, k: (0, 0)),   # x (resident)
                pl.BlockSpec((cp, hp), lambda i, k: (0, 0)),      # W_l
                pl.BlockSpec((cp, hp), lambda i, k: (0, 0)),      # W_r
                pl.BlockSpec((1, hp), lambda i, k: (0, 0)),       # bias
            ],
            out_specs=pl.BlockSpec((tm, hp), lambda i, k: (i, 0)),
            scratch_shapes=[pltpu.VMEM((tm, cp), jnp.float32)],
        ),
        compiler_params=pltpu.CompilerParams(
            dimension_semantics=("parallel", "arbitrary"),
            vmem_limit_bytes=vmem_limit_bytes),
        cost_estimate=cost,
    )(adj_p, x_p, w_l, w_r, b)


def _sage_jk_linear(adj_p, h1_p, w2l, w2r, b2, w3a, w3b, b3, *,
                    tm, tk, out_dtype, vmem_limit_bytes):
    nrows, ncols = adj_p.shape
    nfeat, hp = h1_p.shape
    op = w2l.shape[1]
    grid = (nrows // tm, ncols // tk)
    isz = jnp.dtype(adj_p.dtype).itemsize
    cost = pl.CostEstimate(
        flops=2 * nrows * ncols * hp + 4 * nrows * hp * op
              + 2 * nrows * (hp + op) * op,
        transcendentals=0,
        bytes_accessed=(nrows * ncols + nfeat * hp) * isz
                       + (2 * hp * op + (hp + op) * op + 2 * op) * 4
                       + nrows * op * jnp.dtype(out_dtype).itemsize,
    )
    return pl.pallas_call(
        _sage_jk_kernel,
        out_shape=jax.ShapeDtypeStruct((nrows, op), out_dtype),
        grid_spec=pltpu.PrefetchScalarGridSpec(
            num_scalar_prefetch=0,
            grid=grid,
            in_specs=[
                pl.BlockSpec((tm, tk), lambda i, k: (i, k)),      # A tile
                pl.BlockSpec((nfeat, hp), lambda i, k: (0, 0)),   # h1 (resident)
                pl.BlockSpec((hp, op), lambda i, k: (0, 0)),      # W2_l
                pl.BlockSpec((hp, op), lambda i, k: (0, 0)),      # W2_r
                pl.BlockSpec((1, op), lambda i, k: (0, 0)),       # b2
                pl.BlockSpec((hp, op), lambda i, k: (0, 0)),      # W3 (h1 rows)
                pl.BlockSpec((op, op), lambda i, k: (0, 0)),      # W3 (h2 rows)
                pl.BlockSpec((1, op), lambda i, k: (0, 0)),       # b3
            ],
            out_specs=pl.BlockSpec((tm, op), lambda i, k: (i, 0)),
            scratch_shapes=[pltpu.VMEM((tm, hp), jnp.float32)],
        ),
        compiler_params=pltpu.CompilerParams(
            dimension_semantics=("parallel", "arbitrary"),
            vmem_limit_bytes=vmem_limit_bytes),
        cost_estimate=cost,
    )(adj_p, h1_p, w2l, w2r, b2, w3a, w3b, b3)


# --------------------------------------------------------------------------
# Wrapper (padding / weight splitting / dtype casts = layout glue)
# --------------------------------------------------------------------------
def _round_up(x, m):
    return (x + m - 1) // m * m


def _pad2(a, rows, cols, dtype):
    return jnp.pad(a, ((0, rows - a.shape[0]),
                       (0, cols - a.shape[1]))).astype(dtype)


def conv_block(x, adj_norm, params, *, compute_dtype=jnp.bfloat16,
               tm=512, tk=2048, vmem_limit_bytes=40 * 1024 * 1024):
    """Full ConvBlock forward via two tiled Pallas kernels.

    compute_dtype: storage dtype for the streamed A / feature operands
      (bf16 recommended; weights, biases and accumulation are always f32).
    tm / tk: row-tile / reduction-tile over nodes (multiples of 128).
    """
    n, cin = x.shape
    hid = params["w1l"].shape[1]
    cout = params["w2l"].shape[1]
    out_dtype = x.dtype

    # Pad channel dims to 128 lanes (lane-dense MXU feed and stores).
    cp = _round_up(cin, 128)
    hp = _round_up(hid, 128)
    op = _round_up(cout, 128)

    # Clamp tiles to the graph; keep them multiples of 128.
    n128 = _round_up(n, 128)
    tm = max(128, min(tm, n128) // 128 * 128)
    tk = max(128, min(tk, n128) // 128 * 128)
    # v7x megacore: keep at least two row tiles whenever the graph allows it.
    half_rows = max(128, (n128 // 2) // 128 * 128)
    tm = min(tm, half_rows)

    # Pad A's rows / cols independently (no lcm rounding on both axes).
    nrows = _round_up(n, tm)          # destination rows (output rows)
    ncols = _round_up(n, tk)          # source columns (aggregation axis)
    nfeat = max(nrows, ncols)         # feature / h1 row extent sliced in-kernel

    adj_p = _pad2(adj_norm, nrows, ncols, compute_dtype)
    x_p = _pad2(x, nfeat, cp, compute_dtype)

    # Weights / biases stay f32 (tiny, VMEM-resident via constant index_maps).
    w1l = _pad2(params["w1l"], cp, hp, jnp.float32)
    w1r = _pad2(params["w1r"], cp, hp, jnp.float32)
    b1 = _pad2(params["b1"], 1, hp, jnp.float32)
    w2l = _pad2(params["w2l"], hp, op, jnp.float32)
    w2r = _pad2(params["w2r"], hp, op, jnp.float32)
    b2 = _pad2(params["b2"], 1, op, jnp.float32)
    w3_full = params["w3"]                     # (2*hid, cout): [h1 ; h2] rows
    w3a = _pad2(w3_full[:hid], hp, op, jnp.float32)
    w3b = _pad2(w3_full[hid:], op, op, jnp.float32)
    b3 = _pad2(params["b3"], 1, op, jnp.float32)

    h1 = _sage_conv(adj_p, x_p, w1l, w1r, b1, tm=tm, tk=tk,
                    out_dtype=compute_dtype, vmem_limit_bytes=vmem_limit_bytes)
    if nfeat > nrows:
        # Zero-extend h1 so kernel 2's aggregation k-slices stay in bounds;
        # the extra rows only ever multiply zero-padded A columns.
        h1 = jnp.pad(h1, ((0, nfeat - nrows), (0, 0)))
    y = _sage_jk_linear(adj_p, h1, w2l, w2r, b2, w3a, w3b, b3, tm=tm, tk=tk,
                        out_dtype=out_dtype, vmem_limit_bytes=vmem_limit_bytes)
    return y[:n, :cout]


# --------------------------------------------------------------------------
# Params / reference
# --------------------------------------------------------------------------
def init_params(key, cin, hidden, cout):
    """Deterministic synthetic init (PyTorch-Linear-style uniform bounds)."""
    assert cout == hidden, \
        "JumpingKnowledge('cat') + Linear(2*hidden) requires cout == hidden"
    ks = jax.random.split(key, 8)

    def u(k, shape, fan_in):
        b = 1.0 / jnp.sqrt(jnp.float32(fan_in))
        return jax.random.uniform(k, shape, jnp.float32, -b, b)

    return {
        # SAGEConv(cin, hidden): lin_l (neighbors, with bias) + lin_r (root)
        "w1l": u(ks[0], (cin, hidden), cin),
        "w1r": u(ks[1], (cin, hidden), cin),
        "b1":  u(ks[2], (1, hidden), cin),
        # SAGEConv(hidden, cout)
        "w2l": u(ks[3], (hidden, cout), hidden),
        "w2r": u(ks[4], (hidden, cout), hidden),
        "b2":  u(ks[5], (1, cout), hidden),
        # Linear(2*hidden, cout)
        "w3":  u(ks[6], (2 * hidden, cout), 2 * hidden),
        "b3":  u(ks[7], (1, cout), 2 * hidden),
    }


def reference(x, adj_norm, p):
    """Pure-JAX reference of the same forward pass."""
    h1 = jax.nn.relu(adj_norm @ x @ p["w1l"] + x @ p["w1r"] + p["b1"])
    h2 = jax.nn.relu(adj_norm @ h1 @ p["w2l"] + h1 @ p["w2r"] + p["b2"])
    cat = jnp.concatenate([h1, h2], axis=-1)
    return jax.nn.relu(cat @ p["w3"] + p["b3"])


# --------------------------------------------------------------------------
# Demo
# --------------------------------------------------------------------------
if __name__ == "__main__":
    key = jax.random.PRNGKey(0)
    k_x, k_e, k_p = jax.random.split(key, 3)

    N, E = 16, 48          # nodes, edges
    CIN, HID, COUT = 8, 32, 32

    # Node features and a random edge set (edge_index[0]=src j, [1]=dst i).
    x = jax.random.normal(k_x, (N, CIN), jnp.float32)
    edge_index = jax.random.randint(k_e, (2, E), 0, N, jnp.int32)

    # Glue: dense row-normalized adjacency (mean aggregation operator,
    # deduplicated edges).
    adj = jnp.zeros((N, N), jnp.float32).at[edge_index[1],
                                            edge_index[0]].set(1.0)
    deg = jnp.sum(adj, axis=1, keepdims=True)
    adj_norm = adj / jnp.maximum(deg, 1.0)

    params = init_params(k_p, CIN, HID, COUT)
    ref = reference(x, adj_norm, params)

    # f32 streams: tight check against the f32 reference.
    out_f32 = jax.block_until_ready(
        conv_block(x, adj_norm, params, compute_dtype=jnp.float32))
    assert out_f32.shape == (N, COUT)
    assert jnp.allclose(out_f32, ref, atol=1e-5, rtol=1e-5)

    # bf16 A / feature streams with f32 weights + accumulation (default perf
    # path on v5e/v6e/v7x).
    out_bf16 = jax.block_until_ready(
        conv_block(x, adj_norm, params, compute_dtype=jnp.bfloat16))
    assert out_bf16.shape == (N, COUT)
    assert jnp.allclose(out_bf16, ref, atol=5e-2, rtol=5e-2)

    print("KERNEL_OK")
</pallas_src>

<mosaic_0001>
module attributes {stable_mosaic.version = 11 : i64} {
  func.func @_sage_kernel(%arg0: i32, %arg1: i32, %arg2: memref<128x128xf32, #tpu.memory_space<vmem>>, %arg3: memref<128x128xf32, #tpu.memory_space<vmem>>, %arg4: memref<128x128xf32, #tpu.memory_space<vmem>>, %arg5: memref<128x128xf32, #tpu.memory_space<vmem>>, %arg6: memref<1x128xf32, #tpu.memory_space<vmem>>, %arg7: memref<128x128xf32, #tpu.memory_space<vmem>>, %arg8: memref<128x128xf32, #tpu.memory_space<vmem>>) attributes {dimension_semantics = [#tpu.dimension_semantics<parallel>, #tpu.dimension_semantics<arbitrary>], iteration_bounds = array<i64: 1, 1>, scalar_prefetch = 0 : i64, scratch_operands = 1 : i64, tpu.core_type = #tpu.core_type<tc>, window_params = [{transform_indices = @transform_0, window_bounds = array<i64: 128, 128>}, {pipeline_mode = #tpu.pipeline_mode<synchronous>, transform_indices = @transform_1, window_bounds = array<i64: 128, 128>}, {pipeline_mode = #tpu.pipeline_mode<synchronous>, transform_indices = @transform_2, window_bounds = array<i64: 128, 128>}, {pipeline_mode = #tpu.pipeline_mode<synchronous>, transform_indices = @transform_3, window_bounds = array<i64: 128, 128>}, {pipeline_mode = #tpu.pipeline_mode<synchronous>, transform_indices = @transform_4, window_bounds = array<i64: 1, 128>}, {transform_indices = @transform_5, window_bounds = array<i64: 128, 128>}]} {
    %c0_i32 = arith.constant 0 : i32
    %0 = arith.cmpi eq, %arg1, %c0_i32 : i32
    %1 = arith.extui %0 : i1 to i32
    %c0_i32_0 = arith.constant 0 : i32
    %2 = arith.cmpi ne, %1, %c0_i32_0 : i32
    scf.if %2 {
      %cst_9 = arith.constant 0.000000e+00 : f32
      %15 = vector.broadcast %cst_9 : f32 to vector<128x128xf32>
      %c0_10 = arith.constant 0 : index
      %c0_11 = arith.constant 0 : index
      %16 = vector.load %arg8[%c0_10, %c0_11] : memref<128x128xf32, #tpu.memory_space<vmem>>, vector<128x128xf32>
      tpu.vector_store %arg8[%c0_10, %c0_11], %15 {strides = array<i32>} : memref<128x128xf32, #tpu.memory_space<vmem>>, vector<128x128xf32>,
    } else {
    }
    %c128_i32 = arith.constant 128 : i32
    %3 = arith.muli %arg1, %c128_i32 : i32
    %4 = tpu.assume_multiple %3, 128 : i32
    %5 = arith.index_cast %4 : i32 to index
    %c0 = arith.constant 0 : index
    %6 = vector.load %arg3[%5, %c0] : memref<128x128xf32, #tpu.memory_space<vmem>>, vector<128x128xf32>
    %c0_1 = arith.constant 0 : index
    %c0_2 = arith.constant 0 : index
    %7 = vector.load %arg8[%c0_1, %c0_2] : memref<128x128xf32, #tpu.memory_space<vmem>>, vector<128x128xf32>
    %c0_3 = arith.constant 0 : index
    %c0_4 = arith.constant 0 : index
    %8 = vector.load %arg2[%c0_3, %c0_4] : memref<128x128xf32, #tpu.memory_space<vmem>>, vector<128x128xf32>
    %cst = arith.constant dense<0.000000e+00> : vector<128x128xf32>
    %9 = tpu.matmul %8, %6, %cst {dimension_numbers = #tpu.dot_dimension_numbers<[1], [0], [0], [1], [0, 0, 1, 1], [], []>} : vector<128x128xf32>, vector<128x128xf32>, vector<128x128xf32> -> vector<128x128xf32>
    %10 = arith.addf %7, %9 : vector<128x128xf32>
    %c0_5 = arith.constant 0 : index
    %c0_6 = arith.constant 0 : index
    %11 = vector.load %arg8[%c0_5, %c0_6] : memref<128x128xf32, #tpu.memory_space<vmem>>, vector<128x128xf32>
    tpu.vector_store %arg8[%c0_5, %c0_6], %10 {strides = array<i32>} : memref<128x128xf32, #tpu.memory_space<vmem>>, vector<128x128xf32>,
    %c0_i32_7 = arith.constant 0 : i32
    %12 = arith.cmpi eq, %arg1, %c0_i32_7 : i32
    %13 = arith.extui %12 : i1 to i32
    %c0_i32_8 = arith.constant 0 : i32
    %14 = arith.cmpi ne, %13, %c0_i32_8 : i32
    scf.if %14 {
      %c128_i32_9 = arith.constant 128 : i32
      %15 = arith.muli %arg0, %c128_i32_9 : i32
      %16 = tpu.assume_multiple %15, 128 : i32
      %17 = arith.index_cast %16 : i32 to index
      %c0_10 = arith.constant 0 : index
      %18 = vector.load %arg3[%17, %c0_10] : memref<128x128xf32, #tpu.memory_space<vmem>>, vector<128x128xf32>
      %c0_11 = arith.constant 0 : index
      %c0_12 = arith.constant 0 : index
      %19 = vector.load %arg8[%c0_11, %c0_12] : memref<128x128xf32, #tpu.memory_space<vmem>>, vector<128x128xf32>
      %c0_13 = arith.constant 0 : index
      %c0_14 = arith.constant 0 : index
      %20 = vector.load %arg4[%c0_13, %c0_14] : memref<128x128xf32, #tpu.memory_space<vmem>>, vector<128x128xf32>
      %cst_15 = arith.constant dense<0.000000e+00> : vector<128x128xf32>
      %21 = tpu.matmul %19, %20, %cst_15 {dimension_numbers = #tpu.dot_dimension_numbers<[1], [0], [0], [1], [0, 0, 1, 1], [], []>} : vector<128x128xf32>, vector<128x128xf32>, vector<128x128xf32> -> vector<128x128xf32>
      %c0_16 = arith.constant 0 : index
      %c0_17 = arith.constant 0 : index
      %22 = vector.load %arg5[%c0_16, %c0_17] : memref<128x128xf32, #tpu.memory_space<vmem>>, vector<128x128xf32>
      %cst_18 = arith.constant dense<0.000000e+00> : vector<128x128xf32>
      %23 = tpu.matmul %18, %22, %cst_18 {dimension_numbers = #tpu.dot_dimension_numbers<[1], [0], [0], [1], [0, 0, 1, 1], [], []>} : vector<128x128xf32>, vector<128x128xf32>, vector<128x128xf32> -> vector<128x128xf32>
      %24 = arith.addf %21, %23 : vector<128x128xf32>
      %c0_19 = arith.constant 0 : index
      %c0_20 = arith.constant 0 : index
      %25 = vector.load %arg6[%c0_19, %c0_20] : memref<1x128xf32, #tpu.memory_space<vmem>>, vector<1x128xf32>
      %26 = vector.broadcast %25 : vector<1x128xf32> to vector<128x128xf32>
      %27 = arith.addf %24, %26 : vector<128x128xf32>
      %cst_21 = arith.constant 0.000000e+00 : f32
      %28 = vector.broadcast %cst_21 : f32 to vector<128x128xf32>
      %29 = arith.maximumf %27, %28 : vector<128x128xf32>
      %c0_22 = arith.constant 0 : index
      %c0_23 = arith.constant 0 : index
      %30 = vector.load %arg7[%c0_22, %c0_23] : memref<128x128xf32, #tpu.memory_space<vmem>>, vector<128x128xf32>
      tpu.vector_store %arg7[%c0_22, %c0_23], %29 {strides = array<i32>} : memref<128x128xf32, #tpu.memory_space<vmem>>, vector<128x128xf32>,
    } else {
    }
    return
  }
  func.func @transform_0(%arg0: i32, %arg1: i32) -> (i32, i32) {
    %c0_i32 = arith.constant 0 : i32
    return %arg0, %arg1 : i32, i32
  }
  func.func @transform_1(%arg0: i32, %arg1: i32) -> (i32, i32) {
    %c0_i32 = arith.constant 0 : i32
    %c0_i32_0 = arith.constant 0 : i32
    %c0_i32_1 = arith.constant 0 : i32
    return %c0_i32, %c0_i32_0 : i32, i32
  }
  func.func @transform_2(%arg0: i32, %arg1: i32) -> (i32, i32) {
    %c0_i32 = arith.constant 0 : i32
    %c0_i32_0 = arith.constant 0 : i32
    %c0_i32_1 = arith.constant 0 : i32
    return %c0_i32, %c0_i32_0 : i32, i32
  }
  func.func @transform_3(%arg0: i32, %arg1: i32) -> (i32, i32) {
    %c0_i32 = arith.constant 0 : i32
    %c0_i32_0 = arith.constant 0 : i32
    %c0_i32_1 = arith.constant 0 : i32
    return %c0_i32, %c0_i32_0 : i32, i32
  }
  func.func @transform_4(%arg0: i32, %arg1: i32) -> (i32, i32) {
    %c0_i32 = arith.constant 0 : i32
    %c0_i32_0 = arith.constant 0 : i32
    %c0_i32_1 = arith.constant 0 : i32
    return %c0_i32, %c0_i32_0 : i32, i32
  }
  func.func @transform_5(%arg0: i32, %arg1: i32) -> (i32, i32) {
    %c0_i32 = arith.constant 0 : i32
    %c0_i32_0 = arith.constant 0 : i32
    return %arg0, %c0_i32 : i32, i32
  }
}

</mosaic_0001>

<llo_original>
// kernel: tpu_custom_call.1
$region0: #{tpu_custom_call.1}
  #allocation0 [shape = 'u32[]', space=smem, size = 0x4, offset = 0x4, fixed_abs, tag = 'smem constant byte address 0x4 - core index']
  #allocation1 [shape = 'u32[144,128]{1,0:T(1,128)}', space=vmem, size = 0x12000, scoped, tag = 'internal scratch']
  #allocation2 [shape = 'f32[128,128]{1,0:T(8,128)}', space=vmem, size = 0x10000, scoped, tag = 'scratch operand']
  %s0 = inlined_call_operand.hbm [shape: f32[128,128], index: 0, kind: input, shape index: {}]
  %s1 = inlined_call_operand.hbm [shape: f32[128,128], index: 1, kind: input, shape index: {}]
  %s2 = inlined_call_operand.hbm [shape: f32[128,128], index: 2, kind: input, shape index: {}]
  %s3 = inlined_call_operand.hbm [shape: f32[128,128], index: 3, kind: input, shape index: {}]
  %s4 = inlined_call_operand.vmem [shape: f32[1,128], index: 4, kind: input, shape index: {}]
  %s5 = inlined_call_operand.hbm [shape: f32[128,128], index: 5, kind: output, shape index: {}]
  %s6 = sld [smem:[#allocation0]]
  $region54: #{tpu_custom_call.1} parent=0
    _
  %s8 = ssub.s32 1, %s6
  %s9 = scalar_select 0, %s8, %s6
  $region1: #{tpu_custom_call.1} parent=0
    #allocation3 [shape = 'u8[65536]{0}', space=vmem, size = 0x10000, scoped, tag = 'input window, operand 0, single buffered']
    #allocation4 [shape = 's32[1]{0}', space=sflag, size = 0x4, scoped, tag = 'scoped memory for tpu_custom_call.1']
    #allocation5 [shape = 's32[1]{0}', space=sflag, size = 0x4, scoped, tag = 'scoped memory for tpu_custom_call.1']
    #allocation6 [shape = 'u8[65536]{0}', space=vmem, size = 0x10000, scoped, tag = 'input window, operand 1, single buffered']
    #allocation7 [shape = 's32[1]{0}', space=sflag, size = 0x4, scoped, tag = 'scoped memory for tpu_custom_call.1']
    #allocation8 [shape = 'u8[65536]{0}', space=vmem, size = 0x10000, scoped, tag = 'input window, operand 2, single buffered']
    #allocation9 [shape = 'u8[65536]{0}', space=vmem, size = 0x10000, scoped, tag = 'input window, operand 3, single buffered']
    #allocation10 [shape = 's32[1]{0}', space=sflag, size = 0x4, scoped, tag = 'scoped memory for tpu_custom_call.1']
    #allocation11 [shape = 'u8[65536]{0}', space=vmem, size = 0x10000, scoped, tag = 'output window, operand 0, single buffered']
    %10 = vsyncpa [#allocation4], 0
    %11 = vsyncpa [#allocation7], 0
    %12 = vsyncpa [#allocation10], 0
    %13 = vsyncpa [#allocation5], 0
    // Predicated region
    $region2: #{tpu_custom_call.1} parent=1 // pred_check
      _
    $region3: #{tpu_custom_call.1} parent=1 // pred_check_branch
      %15 = sbr.rel (0) target = $region5
    $region4: #{tpu_custom_call.1} parent=1 // pred_region
      %s17 = ssub.s32 2048, 2048
      %18 = vsyncadd [#allocation4], %s17
      %s19 = sshll.u32 [#allocation3], 4
      %s20 = int_to_ptr.vmem [resolvable:$true] %s19
      %25 = dma.hbm_to_vmem [thread:$0]  %s0, 2048, %s20, [#allocation4], 128, 128, 8
    $region5: #{tpu_custom_call.1} parent=1 // pred_fallthru
      _
    // Predicated region
    $region6: #{tpu_custom_call.1} parent=1 // pred_check
      _
    $region7: #{tpu_custom_call.1} parent=1 // pred_check_branch
      %27 = sbr.rel (0) target = $region9
    $region8: #{tpu_custom_call.1} parent=1 // pred_region
      %s29 = ssub.s32 2048, 2048
      %30 = vsyncadd [#allocation7], %s29
      %s31 = sshll.u32 [#allocation6], 4
      %s32 = int_to_ptr.vmem [resolvable:$true] %s31
      %37 = dma.hbm_to_vmem [thread:$0]  %s1, 2048, %s32, [#allocation7], 128, 128, 8
    $region9: #{tpu_custom_call.1} parent=1 // pred_fallthru
      _
    // Predicated region
    $region10: #{tpu_custom_call.1} parent=1 // pred_check
      _
    $region11: #{tpu_custom_call.1} parent=1 // pred_check_branch
      %39 = sbr.rel (0) target = $region13
    $region12: #{tpu_custom_call.1} parent=1 // pred_region
      %s41 = ssub.s32 2048, 2048
      %42 = vsyncadd [#allocation7], %s41
      %s43 = sshll.u32 [#allocation8], 4
      %s44 = int_to_ptr.vmem [resolvable:$true] %s43
      %49 = dma.hbm_to_vmem [thread:$0]  %s2, 2048, %s44, [#allocation7], 128, 128, 8
    $region13: #{tpu_custom_call.1} parent=1 // pred_fallthru
      _
    // Predicated region
    $region14: #{tpu_custom_call.1} parent=1 // pred_check
      _
    $region15: #{tpu_custom_call.1} parent=1 // pred_check_branch
      %51 = sbr.rel (0) target = $region17
    $region16: #{tpu_custom_call.1} parent=1 // pred_region
      %s53 = ssub.s32 2048, 2048
      %54 = vsyncadd [#allocation10], %s53
      %s55 = sshll.u32 [#allocation9], 4
      %s56 = int_to_ptr.vmem [resolvable:$true] %s55
      %61 = dma.hbm_to_vmem [thread:$0]  %s3, 2048, %s56, [#allocation10], 128, 128, 8
    $region17: #{tpu_custom_call.1} parent=1 // pred_fallthru
      _
    // Predicated region
    $region18: #{tpu_custom_call.1} parent=1 // pred_check
      _
    $region19: #{tpu_custom_call.1} parent=1 // pred_check_branch
      %63 = sbr.rel (0) target = $region21
    $region20: #{tpu_custom_call.1} parent=1 // pred_region
      _
    $region21: #{tpu_custom_call.1} parent=1 // pred_fallthru
      _
    // Predicated region
    $region22: #{tpu_custom_call.1} parent=1 // pred_check
      _
    $region23: #{tpu_custom_call.1} parent=1 // pred_check_branch
      %65 = sbr.rel (0) target = $region25
    $region24: #{tpu_custom_call.1} parent=1 // pred_region
      %66 = dma.done [#allocation4], 2048
    $region25: #{tpu_custom_call.1} parent=1 // pred_fallthru
      _
    // Predicated region
    $region26: #{tpu_custom_call.1} parent=1 // pred_check
      _
    $region27: #{tpu_custom_call.1} parent=1 // pred_check_branch
      %68 = sbr.rel (0) target = $region29
    $region28: #{tpu_custom_call.1} parent=1 // pred_region
      %69 = dma.done [#allocation7], 2048
    $region29: #{tpu_custom_call.1} parent=1 // pred_fallthru
      _
    // Predicated region
    $region30: #{tpu_custom_call.1} parent=1 // pred_check
      _
    $region31: #{tpu_custom_call.1} parent=1 // pred_check_branch
      %71 = sbr.rel (0) target = $region33
    $region32: #{tpu_custom_call.1} parent=1 // pred_region
      %72 = dma.done [#allocation7], 2048
    $region33: #{tpu_custom_call.1} parent=1 // pred_fallthru
      _
    // Predicated region
    $region34: #{tpu_custom_call.1} parent=1 // pred_check
      _
    $region35: #{tpu_custom_call.1} parent=1 // pred_check_branch
      %74 = sbr.rel (0) target = $region37
    $region36: #{tpu_custom_call.1} parent=1 // pred_region
      %75 = dma.done [#allocation10], 2048
    $region37: #{tpu_custom_call.1} parent=1 // pred_fallthru
      _
    %p76 = scmp.eq.s32.totalorder 0, 0
    // Predicated region
    $region38: #{tpu_custom_call.1} parent=1 // pred_check
      %p77 = pneg %p76
    $region39: #{tpu_custom_call.1} parent=1 // pred_check_branch
      %79 = sbr.rel (%p77) target = $region41
    $region40: #{tpu_custom_call.1} parent=1 // pred_region
      %80 = vst [vmem:[#allocation2] sm:$0xff] 0.0
      %81 = vst [vmem:[#allocation2 + $0x8] sm:$0xff] 0.0
      %82 = vst [vmem:[#allocation2 + $0x10] sm:$0xff] 0.0
      %83 = vst [vmem:[#allocation2 + $0x18] sm:$0xff] 0.0
      %84 = vst [vmem:[#allocation2 + $0x20] sm:$0xff] 0.0
      %85 = vst [vmem:[#allocation2 + $0x28] sm:$0xff] 0.0
      %86 = vst [vmem:[#allocation2 + $0x30] sm:$0xff] 0.0
      %87 = vst [vmem:[#allocation2 + $0x38] sm:$0xff] 0.0
      %88 = vst [vmem:[#allocation2 + $0x40] sm:$0xff] 0.0
      %89 = vst [vmem:[#allocation2 + $0x48] sm:$0xff] 0.0
      %90 = vst [vmem:[#allocation2 + $0x50] sm:$0xff] 0.0
      %91 = vst [vmem:[#allocation2 + $0x58] sm:$0xff] 0.0
      %92 = vst [vmem:[#allocation2 + $0x60] sm:$0xff] 0.0
      %93 = vst [vmem:[#allocation2 + $0x68] sm:$0xff] 0.0
      %94 = vst [vmem:[#allocation2 + $0x70] sm:$0xff] 0.0
      %95 = vst [vmem:[#allocation2 + $0x78] sm:$0xff] 0.0
    $region41: #{tpu_custom_call.1} parent=1 // pred_fallthru
      _
    %s96 = smul.u32 0, 128
    %s97 = scalar_lea.vmem [#allocation6], %s96
    %v98 = vld [vmem:[%s97] sm:$0xff]
    %v99 = vld [vmem:[%s97 + $0x8] sm:$0xff]
    %v100 = vld [vmem:[%s97 + $0x10] sm:$0xff]
    %v101 = vld [vmem:[%s97 + $0x18] sm:$0xff]
    %v102 = vld [vmem:[%s97 + $0x20] sm:$0xff]
    %v103 = vld [vmem:[%s97 + $0x28] sm:$0xff]
    %v104 = vld [vmem:[%s97 + $0x30] sm:$0xff]
    %v105 = vld [vmem:[%s97 + $0x38] sm:$0xff]
    %v106 = vld [vmem:[%s97 + $0x40] sm:$0xff]
    %v107 = vld [vmem:[%s97 + $0x48] sm:$0xff]
    %v108 = vld [vmem:[%s97 + $0x50] sm:$0xff]
    %v109 = vld [vmem:[%s97 + $0x58] sm:$0xff]
    %v110 = vld [vmem:[%s97 + $0x60] sm:$0xff]
    %v111 = vld [vmem:[%s97 + $0x68] sm:$0xff]
    %v112 = vld [vmem:[%s97 + $0x70] sm:$0xff]
    %v113 = vld [vmem:[%s97 + $0x78] sm:$0xff]
    %v114 = vld [vmem:[#allocation2] sm:$0xff]
    %v115 = vld [vmem:[#allocation2 + $0x8] sm:$0xff]
    %v116 = vld [vmem:[#allocation2 + $0x10] sm:$0xff]
    %v117 = vld [vmem:[#allocation2 + $0x18] sm:$0xff]
    %v118 = vld [vmem:[#allocation2 + $0x20] sm:$0xff]
    %v119 = vld [vmem:[#allocation2 + $0x28] sm:$0xff]
    %v120 = vld [vmem:[#allocation2 + $0x30] sm:$0xff]
    %v121 = vld [vmem:[#allocation2 + $0x38] sm:$0xff]
    %v122 = vld [vmem:[#allocation2 + $0x40] sm:$0xff]
    %v123 = vld [vmem:[#allocation2 + $0x48] sm:$0xff]
    %v124 = vld [vmem:[#allocation2 + $0x50] sm:$0xff]
    %v125 = vld [vmem:[#allocation2 + $0x58] sm:$0xff]
    %v126 = vld [vmem:[#allocation2 + $0x60] sm:$0xff]
    %v127 = vld [vmem:[#allocation2 + $0x68] sm:$0xff]
    %v128 = vld [vmem:[#allocation2 + $0x70] sm:$0xff]
    %v129 = vld [vmem:[#allocation2 + $0x78] sm:$0xff]
    %v130 = vld [vmem:[#allocation3] sm:$0xff]
    %v131 = vld [vmem:[#allocation3 + $0x8] sm:$0xff]
    %v132 = vld [vmem:[#allocation3 + $0x10] sm:$0xff]
    %v133 = vld [vmem:[#allocation3 + $0x18] sm:$0xff]
    %v134 = vld [vmem:[#allocation3 + $0x20] sm:$0xff]
    %v135 = vld [vmem:[#allocation3 + $0x28] sm:$0xff]
    %v136 = vld [vmem:[#allocation3 + $0x30] sm:$0xff]
    %v137 = vld [vmem:[#allocation3 + $0x38] sm:$0xff]
    %v138 = vld [vmem:[#allocation3 + $0x40] sm:$0xff]
    %v139 = vld [vmem:[#allocation3 + $0x48] sm:$0xff]
    %v140 = vld [vmem:[#allocation3 + $0x50] sm:$0xff]
    %v141 = vld [vmem:[#allocation3 + $0x58] sm:$0xff]
    %v142 = vld [vmem:[#allocation3 + $0x60] sm:$0xff]
    %v143 = vld [vmem:[#allocation3 + $0x68] sm:$0xff]
    %v144 = vld [vmem:[#allocation3 + $0x70] sm:$0xff]
    %v145 = vld [vmem:[#allocation3 + $0x78] sm:$0xff]
    %146 = vmatprep.subr.mxu0 0.0
    %147 = vmatpush1.msra.mxu0 %v98
    %148 = vmatprep.subr.mxu0 0.0
    %149 = vmatpush1.msra.mxu0 %v99
    %150 = vmatprep.subr.mxu0 0.0
    %151 = vmatpush1.msra.mxu0 %v100
    %152 = vmatprep.subr.mxu0 0.0
    %153 = vmatpush1.msra.mxu0 %v101
    %154 = vmatprep.subr.mxu0 0.0
    %155 = vmatpush1.msra.mxu0 %v102
    %156 = vmatprep.subr.mxu0 0.0
    %157 = vmatpush1.msra.mxu0 %v103
    %158 = vmatprep.subr.mxu0 0.0
    %159 = vmatpush1.msra.mxu0 %v104
    %160 = vmatprep.subr.mxu0 0.0
    %161 = vmatpush1.msra.mxu0 %v105
    %162 = vmatprep.subr.mxu0 0.0
    %163 = vmatpush1.msra.mxu0 %v106
    %164 = vmatprep.subr.mxu0 0.0
    %165 = vmatpush1.msra.mxu0 %v107
    %166 = vmatprep.subr.mxu0 0.0
    %167 = vmatpush1.msra.mxu0 %v108
    %168 = vmatprep.subr.mxu0 0.0
    %169 = vmatpush1.msra.mxu0 %v109
    %170 = vmatprep.subr.mxu0 0.0
    %171 = vmatpush1.msra.mxu0 %v110
    %172 = vmatprep.subr.mxu0 0.0
    %173 = vmatpush1.msra.mxu0 %v111
    %174 = vmatprep.subr.mxu0 0.0
    %175 = vmatpush1.msra.mxu0 %v112
    %176 = vmatprep.subr.mxu0 0.0
    %177 = vmatpush1.msra.mxu0 %v113
    %178 = vmatprep.subr.mxu0 0.0
    %179 = vmatpush1.msra.mxu0 0.0
    %180 = vmatprep.subr.mxu0 0.0
    %181 = vmatpush1.msra.mxu0 0.0
    %182 = vmatprep.subr.mxu0 0.0
    %183 = vmatpush1.msra.mxu0 0.0
    %184 = vmatprep.subr.mxu0 0.0
    %185 = vmatpush1.msra.mxu0 0.0
    %186 = vmatprep.subr.mxu0 0.0
    %187 = vmatpush1.msra.mxu0 0.0
    %188 = vmatprep.subr.mxu0 0.0
    %189 = vmatpush1.msra.mxu0 0.0
    %190 = vmatprep.subr.mxu0 0.0
    %191 = vmatpush1.msra.mxu0 0.0
    %192 = vmatprep.subr.mxu0 0.0
    %193 = vmatpush1.msra.mxu0 0.0
    %194 = vmatprep.subr.mxu0 0.0
    %195 = vmatpush1.msra.mxu0 0.0
    %196 = vmatprep.subr.mxu0 0.0
    %197 = vmatpush1.msra.mxu0 0.0
    %198 = vmatprep.subr.mxu0 0.0
    %199 = vmatpush1.msra.mxu0 0.0
    %200 = vmatprep.subr.mxu0 0.0
    %201 = vmatpush1.msra.mxu0 0.0
    %202 = vmatprep.subr.mxu0 0.0
    %203 = vmatpush1.msra.mxu0 0.0
    %204 = vmatprep.subr.mxu0 0.0
    %205 = vmatpush1.msra.mxu0 0.0
    %206 = vmatprep.subr.mxu0 0.0
    %207 = vmatpush1.msra.mxu0 0.0
    %208 = vmatprep.subr.mxu0 0.0
    %209 = vmatpush1.msra.mxu0 0.0
    %210 = vmatprep.mubr.f32.mxu0 0.0
    %211 = vmatmul.mubr.f32.gmra.mrb[0].mxu0 %v130
    %v212 = vpop.f32.mrb[0].mxu0
    %v213 = vadd.f32 0.0, %v212
    %v214 = vpop.f32.mrb[0].mxu0
    %215 = vmatprep.mubr.f32.mxu0 0.0
    %216 = vmatmul.mubr.f32.gmra.mrb[0].mxu0 %v131
    %v217 = vpop.f32.mrb[0].mxu0
    %v218 = vadd.f32 0.0, %v217
    %v219 = vpop.f32.mrb[0].mxu0
    %220 = vmatprep.mubr.f32.mxu0 0.0
    %221 = vmatmul.mubr.f32.gmra.mrb[0].mxu0 %v132
    %v222 = vpop.f32.mrb[0].mxu0
    %v223 = vadd.f32 0.0, %v222
    %v224 = vpop.f32.mrb[0].mxu0
    %225 = vmatprep.mubr.f32.mxu0 0.0
    %226 = vmatmul.mubr.f32.gmra.mrb[0].mxu0 %v133
    %v227 = vpop.f32.mrb[0].mxu0
    %v228 = vadd.f32 0.0, %v227
    %v229 = vpop.f32.mrb[0].mxu0
    %230 = vmatprep.mubr.f32.mxu0 0.0
    %231 = vmatmul.mubr.f32.gmra.mrb[0].mxu0 %v134
    %v232 = vpop.f32.mrb[0].mxu0
    %v233 = vadd.f32 0.0, %v232
    %v234 = vpop.f32.mrb[0].mxu0
    %235 = vmatprep.mubr.f32.mxu0 0.0
    %236 = vmatmul.mubr.f32.gmra.mrb[0].mxu0 %v135
    %v237 = vpop.f32.mrb[0].mxu0
    %v238 = vadd.f32 0.0, %v237
    %v239 = vpop.f32.mrb[0].mxu0
    %240 = vmatprep.mubr.f32.mxu0 0.0
    %241 = vmatmul.mubr.f32.gmra.mrb[0].mxu0 %v136
    %v242 = vpop.f32.mrb[0].mxu0
    %v243 = vadd.f32 0.0, %v242
    %v244 = vpop.f32.mrb[0].mxu0
    %245 = vmatprep.mubr.f32.mxu0 0.0
    %246 = vmatmul.mubr.f32.gmra.mrb[0].mxu0 %v137
    %v247 = vpop.f32.mrb[0].mxu0
    %v248 = vadd.f32 0.0, %v247
    %v249 = vpop.f32.mrb[0].mxu0
    %250 = vmatprep.mubr.f32.mxu0 0.0
    %251 = vmatmul.mubr.f32.gmra.mrb[0].mxu0 %v138
    %v252 = vpop.f32.mrb[0].mxu0
    %v253 = vadd.f32 0.0, %v252
    %v254 = vpop.f32.mrb[0].mxu0
    %255 = vmatprep.mubr.f32.mxu0 0.0
    %256 = vmatmul.mubr.f32.gmra.mrb[0].mxu0 %v139
    %v257 = vpop.f32.mrb[0].mxu0
    %v258 = vadd.f32 0.0, %v257
    %v259 = vpop.f32.mrb[0].mxu0
    %260 = vmatprep.mubr.f32.mxu0 0.0
    %261 = vmatmul.mubr.f32.gmra.mrb[0].mxu0 %v140
    %v262 = vpop.f32.mrb[0].mxu0
    %v263 = vadd.f32 0.0, %v262
    %v264 = vpop.f32.mrb[0].mxu0
    %265 = vmatprep.mubr.f32.mxu0 0.0
    %266 = vmatmul.mubr.f32.gmra.mrb[0].mxu0 %v141
    %v267 = vpop.f32.mrb[0].mxu0
    %v268 = vadd.f32 0.0, %v267
    %v269 = vpop.f32.mrb[0].mxu0
    %270 = vmatprep.mubr.f32.mxu0 0.0
    %271 = vmatmul.mubr.f32.gmra.mrb[0].mxu0 %v142
    %v272 = vpop.f32.mrb[0].mxu0
    %v273 = vadd.f32 0.0, %v272
    %v274 = vpop.f32.mrb[0].mxu0
    %275 = vmatprep.mubr.f32.mxu0 0.0
    %276 = vmatmul.mubr.f32.gmra.mrb[0].mxu0 %v143
    %v277 = vpop.f32.mrb[0].mxu0
    %v278 = vadd.f32 0.0, %v277
    %v279 = vpop.f32.mrb[0].mxu0
    %280 = vmatprep.mubr.f32.mxu0 0.0
    %281 = vmatmul.mubr.f32.gmra.mrb[0].mxu0 %v144
    %v282 = vpop.f32.mrb[0].mxu0
    %v283 = vadd.f32 0.0, %v282
    %v284 = vpop.f32.mrb[0].mxu0
    %285 = vmatprep.mubr.f32.mxu0 0.0
    %286 = vmatmul.mubr.f32.gmra.mrb[0].mxu0 %v145
    %v287 = vpop.f32.mrb[0].mxu0
    %v288 = vadd.f32 0.0, %v287
    %v289 = vpop.f32.mrb[0].mxu0
    %290 = vdwg.mxu0
    %v291 = vadd.f32 %v114, %v213
    %v292 = vadd.f32 %v115, %v218
    %v293 = vadd.f32 %v116, %v223
    %v294 = vadd.f32 %v117, %v228
    %v295 = vadd.f32 %v118, %v233
    %v296 = vadd.f32 %v119, %v238
    %v297 = vadd.f32 %v120, %v243
    %v298 = vadd.f32 %v121, %v248
    %v299 = vadd.f32 %v122, %v253
    %v300 = vadd.f32 %v123, %v258
    %v301 = vadd.f32 %v124, %v263
    %v302 = vadd.f32 %v125, %v268
    %v303 = vadd.f32 %v126, %v273
    %v304 = vadd.f32 %v127, %v278
    %v305 = vadd.f32 %v128, %v283
    %v306 = vadd.f32 %v129, %v288
    %307 = vst [vmem:[#allocation2] sm:$0xff] %v291
    %308 = vst [vmem:[#allocation2 + $0x8] sm:$0xff] %v292
    %309 = vst [vmem:[#allocation2 + $0x10] sm:$0xff] %v293
    %310 = vst [vmem:[#allocation2 + $0x18] sm:$0xff] %v294
    %311 = vst [vmem:[#allocation2 + $0x20] sm:$0xff] %v295
    %312 = vst [vmem:[#allocation2 + $0x28] sm:$0xff] %v296
    %313 = vst [vmem:[#allocation2 + $0x30] sm:$0xff] %v297
    %314 = vst [vmem:[#allocation2 + $0x38] sm:$0xff] %v298
    %315 = vst [vmem:[#allocation2 + $0x40] sm:$0xff] %v299
    %316 = vst [vmem:[#allocation2 + $0x48] sm:$0xff] %v300
    %317 = vst [vmem:[#allocation2 + $0x50] sm:$0xff] %v301
    %318 = vst [vmem:[#allocation2 + $0x58] sm:$0xff] %v302
    %319 = vst [vmem:[#allocation2 + $0x60] sm:$0xff] %v303
    %320 = vst [vmem:[#allocation2 + $0x68] sm:$0xff] %v304
    %321 = vst [vmem:[#allocation2 + $0x70] sm:$0xff] %v305
    %322 = vst [vmem:[#allocation2 + $0x78] sm:$0xff] %v306
    // Predicated region
    $region42: #{tpu_custom_call.1} parent=1 // pred_check
      %p323 = pneg %p76
    $region43: #{tpu_custom_call.1} parent=1 // pred_check_branch
      %325 = sbr.rel (%p323) target = $region45
    $region44: #{tpu_custom_call.1} parent=1 // pred_region
      %s326 = smul.u32 0, 128
      %s327 = scalar_lea.vmem [#allocation6], %s326
      %v328 = vld [vmem:[%s327] sm:$0xff]
      %v329 = vld [vmem:[%s327 + $0x8] sm:$0xff]
      %v330 = vld [vmem:[%s327 + $0x10] sm:$0xff]
      %v331 = vld [vmem:[%s327 + $0x18] sm:$0xff]
      %v332 = vld [vmem:[%s327 + $0x20] sm:$0xff]
      %v333 = vld [vmem:[%s327 + $0x28] sm:$0xff]
      %v334 = vld [vmem:[%s327 + $0x30] sm:$0xff]
      %v335 = vld [vmem:[%s327 + $0x38] sm:$0xff]
      %v336 = vld [vmem:[%s327 + $0x40] sm:$0xff]
      %v337 = vld [vmem:[%s327 + $0x48] sm:$0xff]
      %v338 = vld [vmem:[%s327 + $0x50] sm:$0xff]
      %v339 = vld [vmem:[%s327 + $0x58] sm:$0xff]
      %v340 = vld [vmem:[%s327 + $0x60] sm:$0xff]
      %v341 = vld [vmem:[%s327 + $0x68] sm:$0xff]
      %v342 = vld [vmem:[%s327 + $0x70] sm:$0xff]
      %v343 = vld [vmem:[%s327 + $0x78] sm:$0xff]
      %v344 = vld [vmem:[#allocation2] sm:$0xff]
      %v345 = vld [vmem:[#allocation2 + $0x8] sm:$0xff]
      %v346 = vld [vmem:[#allocation2 + $0x10] sm:$0xff]
      %v347 = vld [vmem:[#allocation2 + $0x18] sm:$0xff]
      %v348 = vld [vmem:[#allocation2 + $0x20] sm:$0xff]
      %v349 = vld [vmem:[#allocation2 + $0x28] sm:$0xff]
      %v350 = vld [vmem:[#allocation2 + $0x30] sm:$0xff]
      %v351 = vld [vmem:[#allocation2 + $0x38] sm:$0xff]
      %v352 = vld [vmem:[#allocation2 + $0x40] sm:$0xff]
      %v353 = vld [vmem:[#allocation2 + $0x48] sm:$0xff]
      %v354 = vld [vmem:[#allocation2 + $0x50] sm:$0xff]
      %v355 = vld [vmem:[#allocation2 + $0x58] sm:$0xff]
      %v356 = vld [vmem:[#allocation2 + $0x60] sm:$0xff]
      %v357 = vld [vmem:[#allocation2 + $0x68] sm:$0xff]
      %v358 = vld [vmem:[#allocation2 + $0x70] sm:$0xff]
      %v359 = vld [vmem:[#allocation2 + $0x78] sm:$0xff]
      %v360 = vld [vmem:[#allocation8] sm:$0xff]
      %v361 = vld [vmem:[#allocation8 + $0x8] sm:$0xff]
      %v362 = vld [vmem:[#allocation8 + $0x10] sm:$0xff]
      %v363 = vld [vmem:[#allocation8 + $0x18] sm:$0xff]
      %v364 = vld [vmem:[#allocation8 + $0x20] sm:$0xff]
      %v365 = vld [vmem:[#allocation8 + $0x28] sm:$0xff]
      %v366 = vld [vmem:[#allocation8 + $0x30] sm:$0xff]
      %v367 = vld [vmem:[#allocation8 + $0x38] sm:$0xff]
      %v368 = vld [vmem:[#allocation8 + $0x40] sm:$0xff]
      %v369 = vld [vmem:[#allocation8 + $0x48] sm:$0xff]
      %v370 = vld [vmem:[#allocation8 + $0x50] sm:$0xff]
      %v371 = vld [vmem:[#allocation8 + $0x58] sm:$0xff]
      %v372 = vld [vmem:[#allocation8 + $0x60] sm:$0xff]
      %v373 = vld [vmem:[#allocation8 + $0x68] sm:$0xff]
      %v374 = vld [vmem:[#allocation8 + $0x70] sm:$0xff]
      %v375 = vld [vmem:[#allocation8 + $0x78] sm:$0xff]
      %v376 = vld [vmem:[#allocation9] sm:$0xff]
      %v377 = vld [vmem:[#allocation9 + $0x8] sm:$0xff]
      %v378 = vld [vmem:[#allocation9 + $0x10] sm:$0xff]
      %v379 = vld [vmem:[#allocation9 + $0x18] sm:$0xff]
      %v380 = vld [vmem:[#allocation9 + $0x20] sm:$0xff]
      %v381 = vld [vmem:[#allocation9 + $0x28] sm:$0xff]
      %v382 = vld [vmem:[#allocation9 + $0x30] sm:$0xff]
      %v383 = vld [vmem:[#allocation9 + $0x38] sm:$0xff]
      %v384 = vld [vmem:[#allocation9 + $0x40] sm:$0xff]
      %v385 = vld [vmem:[#allocation9 + $0x48] sm:$0xff]
      %v386 = vld [vmem:[#allocation9 + $0x50] sm:$0xff]
      %v387 = vld [vmem:[#allocation9 + $0x58] sm:$0xff]
      %v388 = vld [vmem:[#allocation9 + $0x60] sm:$0xff]
      %v389 = vld [vmem:[#allocation9 + $0x68] sm:$0xff]
      %v390 = vld [vmem:[#allocation9 + $0x70] sm:$0xff]
      %v391 = vld [vmem:[#allocation9 + $0x78] sm:$0xff]
      %392 = vmatprep.subr.mxu0 0.0
      %393 = vmatpush1.msra.mxu0 %v376
      %394 = vmatprep.subr.mxu0 0.0
      %395 = vmatpush1.msra.mxu0 %v377
      %396 = vmatprep.subr.mxu0 0.0
      %397 = vmatpush1.msra.mxu0 %v378
      %398 = vmatprep.subr.mxu0 0.0
      %399 = vmatpush1.msra.mxu0 %v379
      %400 = vmatprep.subr.mxu0 0.0
      %401 = vmatpush1.msra.mxu0 %v380
      %402 = vmatprep.subr.mxu0 0.0
      %403 = vmatpush1.msra.mxu0 %v381
      %404 = vmatprep.subr.mxu0 0.0
      %405 = vmatpush1.msra.mxu0 %v382
      %406 = vmatprep.subr.mxu0 0.0
      %407 = vmatpush1.msra.mxu0 %v383
      %408 = vmatprep.subr.mxu0 0.0
      %409 = vmatpush1.msra.mxu0 %v384
      %410 = vmatprep.subr.mxu0 0.0
      %411 = vmatpush1.msra.mxu0 %v385
      %412 = vmatprep.subr.mxu0 0.0
      %413 = vmatpush1.msra.mxu0 %v386
      %414 = vmatprep.subr.mxu0 0.0
      %415 = vmatpush1.msra.mxu0 %v387
      %416 = vmatprep.subr.mxu0 0.0
      %417 = vmatpush1.msra.mxu0 %v388
      %418 = vmatprep.subr.mxu0 0.0
      %419 = vmatpush1.msra.mxu0 %v389
      %420 = vmatprep.subr.mxu0 0.0
      %421 = vmatpush1.msra.mxu0 %v390
      %422 = vmatprep.subr.mxu0 0.0
      %423 = vmatpush1.msra.mxu0 %v391
      %424 = vmatprep.subr.mxu0 0.0
      %425 = vmatpush1.msra.mxu0 0.0
      %426 = vmatprep.subr.mxu0 0.0
      %427 = vmatpush1.msra.mxu0 0.0
      %428 = vmatprep.subr.mxu0 0.0
      %429 = vmatpush1.msra.mxu0 0.0
      %430 = vmatprep.subr.mxu0 0.0
      %431 = vmatpush1.msra.mxu0 0.0
      %432 = vmatprep.subr.mxu0 0.0
      %433 = vmatpush1.msra.mxu0 0.0
      %434 = vmatprep.subr.mxu0 0.0
      %435 = vmatpush1.msra.mxu0 0.0
      %436 = vmatprep.subr.mxu0 0.0
      %437 = vmatpush1.msra.mxu0 0.0
      %438 = vmatprep.subr.mxu0 0.0
      %439 = vmatpush1.msra.mxu0 0.0
      %440 = vmatprep.subr.mxu0 0.0
      %441 = vmatpush1.msra.mxu0 0.0
      %442 = vmatprep.subr.mxu0 0.0
      %443 = vmatpush1.msra.mxu0 0.0
      %444 = vmatprep.subr.mxu0 0.0
      %445 = vmatpush1.msra.mxu0 0.0
      %446 = vmatprep.subr.mxu0 0.0
      %447 = vmatpush1.msra.mxu0 0.0
      %448 = vmatprep.subr.mxu0 0.0
      %449 = vmatpush1.msra.mxu0 0.0
      %450 = vmatprep.subr.mxu0 0.0
      %451 = vmatpush1.msra.mxu0 0.0
      %452 = vmatprep.subr.mxu0 0.0
      %453 = vmatpush1.msra.mxu0 0.0
      %454 = vmatprep.subr.mxu0 0.0
      %455 = vmatpush1.msra.mxu0 0.0
      %456 = vmatprep.mubr.f32.mxu0 0.0
      %457 = vmatmul.mubr.f32.gmra.mrb[0].mxu0 %v328
      %v458 = vpop.f32.mrb[0].mxu0
      %v459 = vadd.f32 0.0, %v458
      %v460 = vpop.f32.mrb[0].mxu0
      %461 = vmatprep.mubr.f32.mxu0 0.0
      %462 = vmatmul.mubr.f32.gmra.mrb[0].mxu0 %v329
      %v463 = vpop.f32.mrb[0].mxu0
      %v464 = vadd.f32 0.0, %v463
      %v465 = vpop.f32.mrb[0].mxu0
      %466 = vmatprep.mubr.f32.mxu0 0.0
      %467 = vmatmul.mubr.f32.gmra.mrb[0].mxu0 %v330
      %v468 = vpop.f32.mrb[0].mxu0
      %v469 = vadd.f32 0.0, %v468
      %v470 = vpop.f32.mrb[0].mxu0
      %471 = vmatprep.mubr.f32.mxu0 0.0
      %472 = vmatmul.mubr.f32.gmra.mrb[0].mxu0 %v331
      %v473 = vpop.f32.mrb[0].mxu0
      %v474 = vadd.f32 0.0, %v473
      %v475 = vpop.f32.mrb[0].mxu0
      %476 = vmatprep.mubr.f32.mxu0 0.0
      %477 = vmatmul.mubr.f32.gmra.mrb[0].mxu0 %v332
      %v478 = vpop.f32.mrb[0].mxu0
      %v479 = vadd.f32 0.0, %v478
      %v480 = vpop.f32.mrb[0].mxu0
      %481 = vmatprep.mubr.f32.mxu0 0.0
      %482 = vmatmul.mubr.f32.gmra.mrb[0].mxu0 %v333
      %v483 = vpop.f32.mrb[0].mxu0
      %v484 = vadd.f32 0.0, %v483
      %v485 = vpop.f32.mrb[0].mxu0
      %486 = vmatprep.mubr.f32.mxu0 0.0
      %487 = vmatmul.mubr.f32.gmra.mrb[0].mxu0 %v334
      %v488 = vpop.f32.mrb[0].mxu0
      %v489 = vadd.f32 0.0, %v488
      %v490 = vpop.f32.mrb[0].mxu0
      %491 = vmatprep.mubr.f32.mxu0 0.0
      %492 = vmatmul.mubr.f32.gmra.mrb[0].mxu0 %v335
      %v493 = vpop.f32.mrb[0].mxu0
      %v494 = vadd.f32 0.0, %v493
      %v495 = vpop.f32.mrb[0].mxu0
      %496 = vmatprep.mubr.f32.mxu0 0.0
      %497 = vmatmul.mubr.f32.gmra.mrb[0].mxu0 %v336
      %v498 = vpop.f32.mrb[0].mxu0
      %v499 = vadd.f32 0.0, %v498
      %v500 = vpop.f32.mrb[0].mxu0
      %501 = vmatprep.mubr.f32.mxu0 0.0
      %502 = vmatmul.mubr.f32.gmra.mrb[0].mxu0 %v337
      %v503 = vpop.f32.mrb[0].mxu0
      %v504 = vadd.f32 0.0, %v503
      %v505 = vpop.f32.mrb[0].mxu0
      %506 = vmatprep.mubr.f32.mxu0 0.0
      %507 = vmatmul.mubr.f32.gmra.mrb[0].mxu0 %v338
      %v508 = vpop.f32.mrb[0].mxu0
      %v509 = vadd.f32 0.0, %v508
      %v510 = vpop.f32.mrb[0].mxu0
      %511 = vmatprep.mubr.f32.mxu0 0.0
      %512 = vmatmul.mubr.f32.gmra.mrb[0].mxu0 %v339
      %v513 = vpop.f32.mrb[0].mxu0
      %v514 = vadd.f32 0.0, %v513
      %v515 = vpop.f32.mrb[0].mxu0
      %516 = vmatprep.mubr.f32.mxu0 0.0
      %517 = vmatmul.mubr.f32.gmra.mrb[0].mxu0 %v340
      %v518 = vpop.f32.mrb[0].mxu0
      %v519 = vadd.f32 0.0, %v518
      %v520 = vpop.f32.mrb[0].mxu0
      %521 = vmatprep.mubr.f32.mxu0 0.0
      %522 = vmatmul.mubr.f32.gmra.mrb[0].mxu0 %v341
      %v523 = vpop.f32.mrb[0].mxu0
      %v524 = vadd.f32 0.0, %v523
      %v525 = vpop.f32.mrb[0].mxu0
      %526 = vmatprep.mubr.f32.mxu0 0.0
      %527 = vmatmul.mubr.f32.gmra.mrb[0].mxu0 %v342
      %v528 = vpop.f32.mrb[0].mxu0
      %v529 = vadd.f32 0.0, %v528
      %v530 = vpop.f32.mrb[0].mxu0
      %531 = vmatprep.mubr.f32.mxu0 0.0
      %532 = vmatmul.mubr.f32.gmra.mrb[0].mxu0 %v343
      %v533 = vpop.f32.mrb[0].mxu0
      %v534 = vadd.f32 0.0, %v533
      %v535 = vpop.f32.mrb[0].mxu0
      %536 = vdwg.mxu0
      %537 = vmatprep.subr.mxu0 0.0
      %538 = vmatpush1.msra.mxu0 %v360
      %539 = vmatprep.subr.mxu0 0.0
      %540 = vmatpush1.msra.mxu0 %v361
      %541 = vmatprep.subr.mxu0 0.0
      %542 = vmatpush1.msra.mxu0 %v362
      %543 = vmatprep.subr.mxu0 0.0
      %544 = vmatpush1.msra.mxu0 %v363
      %545 = vmatprep.subr.mxu0 0.0
      %546 = vmatpush1.msra.mxu0 %v364
      %547 = vmatprep.subr.mxu0 0.0
      %548 = vmatpush1.msra.mxu0 %v365
      %549 = vmatprep.subr.mxu0 0.0
      %550 = vmatpush1.msra.mxu0 %v366
      %551 = vmatprep.subr.mxu0 0.0
      %552 = vmatpush1.msra.mxu0 %v367
      %553 = vmatprep.subr.mxu0 0.0
      %554 = vmatpush1.msra.mxu0 %v368
      %555 = vmatprep.subr.mxu0 0.0
      %556 = vmatpush1.msra.mxu0 %v369
      %557 = vmatprep.subr.mxu0 0.0
      %558 = vmatpush1.msra.mxu0 %v370
      %559 = vmatprep.subr.mxu0 0.0
      %560 = vmatpush1.msra.mxu0 %v371
      %561 = vmatprep.subr.mxu0 0.0
      %562 = vmatpush1.msra.mxu0 %v372
      %563 = vmatprep.subr.mxu0 0.0
      %564 = vmatpush1.msra.mxu0 %v373
      %565 = vmatprep.subr.mxu0 0.0
      %566 = vmatpush1.msra.mxu0 %v374
      %567 = vmatprep.subr.mxu0 0.0
      %568 = vmatpush1.msra.mxu0 %v375
      %569 = vmatprep.subr.mxu0 0.0
      %570 = vmatpush1.msra.mxu0 0.0
      %571 = vmatprep.subr.mxu0 0.0
      %572 = vmatpush1.msra.mxu0 0.0
      %573 = vmatprep.subr.mxu0 0.0
      %574 = vmatpush1.msra.mxu0 0.0
      %575 = vmatprep.subr.mxu0 0.0
      %576 = vmatpush1.msra.mxu0 0.0
      %577 = vmatprep.subr.mxu0 0.0
      %578 = vmatpush1.msra.mxu0 0.0
      %579 = vmatprep.subr.mxu0 0.0
      %580 = vmatpush1.msra.mxu0 0.0
      %581 = vmatprep.subr.mxu0 0.0
      %582 = vmatpush1.msra.mxu0 0.0
      %583 = vmatprep.subr.mxu0 0.0
      %584 = vmatpush1.msra.mxu0 0.0
      %585 = vmatprep.subr.mxu0 0.0
      %586 = vmatpush1.msra.mxu0 0.0
      %587 = vmatprep.subr.mxu0 0.0
      %588 = vmatpush1.msra.mxu0 0.0
      %589 = vmatprep.subr.mxu0 0.0
      %590 = vmatpush1.msra.mxu0 0.0
      %591 = vmatprep.subr.mxu0 0.0
      %592 = vmatpush1.msra.mxu0 0.0
      %593 = vmatprep.subr.mxu0 0.0
      %594 = vmatpush1.msra.mxu0 0.0
      %595 = vmatprep.subr.mxu0 0.0
      %596 = vmatpush1.msra.mxu0 0.0
      %597 = vmatprep.subr.mxu0 0.0
      %598 = vmatpush1.msra.mxu0 0.0
      %599 = vmatprep.subr.mxu0 0.0
      %600 = vmatpush1.msra.mxu0 0.0
      %601 = vmatprep.mubr.f32.mxu0 0.0
      %602 = vmatmul.mubr.f32.gmra.mrb[0].mxu0 %v344
      %v603 = vpop.f32.mrb[0].mxu0
      %v604 = vadd.f32 %v459, %v603
      %v605 = vpop.f32.mrb[0].mxu0
      %606 = vmatprep.mubr.f32.mxu0 0.0
      %607 = vmatmul.mubr.f32.gmra.mrb[0].mxu0 %v345
      %v608 = vpop.f32.mrb[0].mxu0
      %v609 = vadd.f32 %v464, %v608
      %v610 = vpop.f32.mrb[0].mxu0
      %611 = vmatprep.mubr.f32.mxu0 0.0
      %612 = vmatmul.mubr.f32.gmra.mrb[0].mxu0 %v346
      %v613 = vpop.f32.mrb[0].mxu0
      %v614 = vadd.f32 %v469, %v613
      %v615 = vpop.f32.mrb[0].mxu0
      %616 = vmatprep.mubr.f32.mxu0 0.0
      %617 = vmatmul.mubr.f32.gmra.mrb[0].mxu0 %v347
      %v618 = vpop.f32.mrb[0].mxu0
      %v619 = vadd.f32 %v474, %v618
      %v620 = vpop.f32.mrb[0].mxu0
      %621 = vmatprep.mubr.f32.mxu0 0.0
      %622 = vmatmul.mubr.f32.gmra.mrb[0].mxu0 %v348
      %v623 = vpop.f32.mrb[0].mxu0
      %v624 = vadd.f32 %v479, %v623
      %v625 = vpop.f32.mrb[0].mxu0
      %626 = vmatprep.mubr.f32.mxu0 0.0
      %627 = vmatmul.mubr.f32.gmra.mrb[0].mxu0 %v349
      %v628 = vpop.f32.mrb[0].mxu0
      %v629 = vadd.f32 %v484, %v628
      %v630 = vpop.f32.mrb[0].mxu0
      %631 = vmatprep.mubr.f32.mxu0 0.0
      %632 = vmatmul.mubr.f32.gmra.mrb[0].mxu0 %v350
      %v633 = vpop.f32.mrb[0].mxu0
      %v634 = vadd.f32 %v489, %v633
      %v635 = vpop.f32.mrb[0].mxu0
      %636 = vmatprep.mubr.f32.mxu0 0.0
      %637 = vmatmul.mubr.f32.gmra.mrb[0].mxu0 %v351
      %v638 = vpop.f32.mrb[0].mxu0
      %v639 = vadd.f32 %v494, %v638
      %v640 = vpop.f32.mrb[0].mxu0
      %641 = vmatprep.mubr.f32.mxu0 0.0
      %642 = vmatmul.mubr.f32.gmra.mrb[0].mxu0 %v352
      %v643 = vpop.f32.mrb[0].mxu0
      %v644 = vadd.f32 %v499, %v643
      %v645 = vpop.f32.mrb[0].mxu0
      %646 = vmatprep.mubr.f32.mxu0 0.0
      %647 = vmatmul.mubr.f32.gmra.mrb[0].mxu0 %v353
      %v648 = vpop.f32.mrb[0].mxu0
      %v649 = vadd.f32 %v504, %v648
      %v650 = vpop.f32.mrb[0].mxu0
      %651 = vmatprep.mubr.f32.mxu0 0.0
      %652 = vmatmul.mubr.f32.gmra.mrb[0].mxu0 %v354
      %v653 = vpop.f32.mrb[0].mxu0
      %v654 = vadd.f32 %v509, %v653
      %v655 = vpop.f32.mrb[0].mxu0
      %656 = vmatprep.mubr.f32.mxu0 0.0
      %657 = vmatmul.mubr.f32.gmra.mrb[0].mxu0 %v355
      %v658 = vpop.f32.mrb[0].mxu0
      %v659 = vadd.f32 %v514, %v658
      %v660 = vpop.f32.mrb[0].mxu0
      %661 = vmatprep.mubr.f32.mxu0 0.0
      %662 = vmatmul.mubr.f32.gmra.mrb[0].mxu0 %v356
      %v663 = vpop.f32.mrb[0].mxu0
      %v664 = vadd.f32 %v519, %v663
      %v665 = vpop.f32.mrb[0].mxu0
      %666 = vmatprep.mubr.f32.mxu0 0.0
      %667 = vmatmul.mubr.f32.gmra.mrb[0].mxu0 %v357
      %v668 = vpop.f32.mrb[0].mxu0
      %v669 = vadd.f32 %v524, %v668
      %v670 = vpop.f32.mrb[0].mxu0
      %671 = vmatprep.mubr.f32.mxu0 0.0
      %672 = vmatmul.mubr.f32.gmra.mrb[0].mxu0 %v358
      %v673 = vpop.f32.mrb[0].mxu0
      %v674 = vadd.f32 %v529, %v673
      %v675 = vpop.f32.mrb[0].mxu0
      %676 = vmatprep.mubr.f32.mxu0 0.0
      %677 = vmatmul.mubr.f32.gmra.mrb[0].mxu0 %v359
      %v678 = vpop.f32.mrb[0].mxu0
      %v679 = vadd.f32 %v534, %v678
      %v680 = vpop.f32.mrb[0].mxu0
      %681 = vdwg.mxu0
      %v682 = vld [vmem:[%s4] sm:$0x1]
      %v684 = vlaneseq
      %v685 = vshrl.u32 %v684, 7
      %v686 = vsub.s32 0, %v685
      %v687 = vrot.slane %v682, %v686
      %v689 = vadd.f32 %v604, %v687
      %v690 = vadd.f32 %v609, %v687
      %v691 = vadd.f32 %v614, %v687
      %v692 = vadd.f32 %v619, %v687
      %v693 = vadd.f32 %v624, %v687
      %v694 = vadd.f32 %v629, %v687
      %v695 = vadd.f32 %v634, %v687
      %v696 = vadd.f32 %v639, %v687
      %v697 = vadd.f32 %v644, %v687
      %v698 = vadd.f32 %v649, %v687
      %v699 = vadd.f32 %v654, %v687
      %v700 = vadd.f32 %v659, %v687
      %v701 = vadd.f32 %v664, %v687
      %v702 = vadd.f32 %v669, %v687
      %v703 = vadd.f32 %v674, %v687
      %v704 = vadd.f32 %v679, %v687
      %v705 = vmax.f32 %v689, 0.0
      %v706 = vmax.f32 %v690, 0.0
      %v707 = vmax.f32 %v691, 0.0
      %v708 = vmax.f32 %v692, 0.0
      %v709 = vmax.f32 %v693, 0.0
      %v710 = vmax.f32 %v694, 0.0
      %v711 = vmax.f32 %v695, 0.0
      %v712 = vmax.f32 %v696, 0.0
      %v713 = vmax.f32 %v697, 0.0
      %v714 = vmax.f32 %v698, 0.0
      %v715 = vmax.f32 %v699, 0.0
      %v716 = vmax.f32 %v700, 0.0
      %v717 = vmax.f32 %v701, 0.0
      %v718 = vmax.f32 %v702, 0.0
      %v719 = vmax.f32 %v703, 0.0
      %v720 = vmax.f32 %v704, 0.0
      %721 = vst [vmem:[#allocation11] sm:$0xff] %v705
      %722 = vst [vmem:[#allocation11 + $0x8] sm:$0xff] %v706
      %723 = vst [vmem:[#allocation11 + $0x10] sm:$0xff] %v707
      %724 = vst [vmem:[#allocation11 + $0x18] sm:$0xff] %v708
      %725 = vst [vmem:[#allocation11 + $0x20] sm:$0xff] %v709
      %726 = vst [vmem:[#allocation11 + $0x28] sm:$0xff] %v710
      %727 = vst [vmem:[#allocation11 + $0x30] sm:$0xff] %v711
      %728 = vst [vmem:[#allocation11 + $0x38] sm:$0xff] %v712
      %729 = vst [vmem:[#allocation11 + $0x40] sm:$0xff] %v713
      %730 = vst [vmem:[#allocation11 + $0x48] sm:$0xff] %v714
      %731 = vst [vmem:[#allocation11 + $0x50] sm:$0xff] %v715
      %732 = vst [vmem:[#allocation11 + $0x58] sm:$0xff] %v716
      %733 = vst [vmem:[#allocation11 + $0x60] sm:$0xff] %v717
      %734 = vst [vmem:[#allocation11 + $0x68] sm:$0xff] %v718
      %735 = vst [vmem:[#allocation11 + $0x70] sm:$0xff] %v719
      %736 = vst [vmem:[#allocation11 + $0x78] sm:$0xff] %v720
    $region45: #{tpu_custom_call.1} parent=1 // pred_fallthru
      _
    // Predicated region
    $region46: #{tpu_custom_call.1} parent=1 // pred_check
      _
    $region47: #{tpu_custom_call.1} parent=1 // pred_check_branch
      %738 = sbr.rel (0) target = $region49
    $region48: #{tpu_custom_call.1} parent=1 // pred_region
      %s740 = ssub.s32 2048, 2048
      %741 = vsyncadd [#allocation5], %s740
      %s742 = sshll.u32 [#allocation11], 4
      %s743 = int_to_ptr.vmem [resolvable:$true] %s742
      %748 = dma.vmem_to_hbm [thread:$0]  %s743, 2048, %s5, [#allocation5], 128, 128, 8
    $region49: #{tpu_custom_call.1} parent=1 // pred_fallthru
      _
    // Predicated region
    $region50: #{tpu_custom_call.1} parent=1 // pred_check
      _
    $region51: #{tpu_custom_call.1} parent=1 // pred_check_branch
      %750 = sbr.rel (0) target = $region53
    $region52: #{tpu_custom_call.1} parent=1 // pred_region
      %751 = dma.done [#allocation5], 2048
    $region53: #{tpu_custom_call.1} parent=1 // pred_fallthru
      _
    %752 = vsyncpa [#allocation4], 1
    %753 = vsyncpa [#allocation7], 1
    %754 = vsyncpa [#allocation10], 1
    %755 = vsyncpa [#allocation5], 1

</llo_original>
